<compile_context>
chip_gen: v7x
topology: tpu7x:2x2x1
jax: 0.10.0
libtpu: 0.0.40
codegen_flags: <defaults>
</compile_context>

<pallas_src>
import functools

import jax
import jax.numpy as jnp
from jax.experimental import pallas as pl
from jax.experimental.pallas import tpu as pltpu

LANE = 128
BF16_ROW_TILE = 16   # bf16 packs 16 rows per vreg sublane group


def _round_up(n, m):
    return ((n + m - 1) // m) * m


def _bf16_elementwise_ok():
    """bf16 VPU/EUP exists on v6e/v7x; v5e and older must do f32 elementwise."""
    try:
        kind = jax.devices()[0].device_kind.lower()
    except Exception:
        return False
    return not any(t in kind for t in ("v2", "v3", "v4", "v5"))


def _choose_tile_b(batch):
    """Batch-tile rows: multiple of 16 (bf16 packing); >= 2 tiles for mid/large
    batches so v7x's second TensorCore gets work; cap 256 to fill the 256-wide
    MXU M dimension on v6e/v7x."""
    if batch < 32:
        return _round_up(max(batch, 1), BF16_ROW_TILE)
    if batch >= 512:
        return 256
    return min(256, _round_up(-(-batch // 2), BF16_ROW_TILE))


# --------------------------------------------------------------------------- #
# Kernel
# --------------------------------------------------------------------------- #
def _make_kernel(num_lstm_layers, hidden_pad, ew_dtype):
    """Fused fc1 -> (LSTM cell)^L -> fc2 kernel for one batch tile.

    ew_dtype: dtype for the gate nonlinearities (bf16 on v6e/v7x, f32 on v5e).
    """

    def kernel(x_ref, w1_ref, b1_ref, *rest):
        # rest = [w_ih_0, bias_0, ..., w_ih_{L-1}, bias_{L-1}, w2, b2, out_ref]
        lstm_refs = rest[: 2 * num_lstm_layers]
        w2_ref, b2_ref, out_ref = rest[2 * num_lstm_layers:]

        Hp = hidden_pad  # multiple of 128 -> all gate slices are lane-aligned

        # fc1 + ReLU: x already bf16 (cast in wrapper); f32 accumulate + f32 bias/relu.
        h = jnp.dot(x_ref[...], w1_ref[...], preferred_element_type=jnp.float32)
        h = jnp.maximum(h + b1_ref[...], 0.0)

        # LSTM layers: seq_len == 1 and zero initial state -> one cell step each;
        # the forget gate was dropped at pack time (f * c0 == 0).
        for layer in range(num_lstm_layers):
            w_ih_ref = lstm_refs[2 * layer]        # (Hp, 3*Hp) = [i | g | o], bf16
            bias = lstm_refs[2 * layer + 1][...]   # (1, 3*Hp), f32 (= b_ih + b_hh)
            gates = jnp.dot(
                h.astype(w_ih_ref.dtype), w_ih_ref[...],
                preferred_element_type=jnp.float32,
            ) + bias
            gates = gates.astype(ew_dtype)         # bf16 transcendentals on v6e/v7x
            i_g = jax.nn.sigmoid(gates[:, 0:Hp])
            g_g = jnp.tanh(gates[:, Hp:2 * Hp])
            o_g = jax.nn.sigmoid(gates[:, 2 * Hp:3 * Hp])
            h = o_g * jnp.tanh(i_g * g_g)          # stays in ew_dtype

        # fc2: lane-dense store (out block width is a multiple of 128).
        out_ref[...] = jnp.dot(
            h.astype(w2_ref.dtype), w2_ref[...],
            preferred_element_type=jnp.float32,
        ) + b2_ref[...]

    return kernel


# --------------------------------------------------------------------------- #
# Wrapper
# --------------------------------------------------------------------------- #
def comment_classifier_forward(x, packed, *, num_lstm_layers, output_dim):
    """Run the fused CommentClassifier forward pass with one pallas_call."""
    batch, input_dim = x.shape
    in_pad, hidden_pad = packed["w1"].shape
    out_pad = packed["w2"].shape[1]

    tile_b = _choose_tile_b(batch)
    batch_pad = _round_up(batch, tile_b)
    grid = (batch_pad // tile_b,)

    # Pad AND cast x to bf16: halves the only streamed DMA; kernel multiplies
    # in bf16 anyway. Zero-padded rows/cols are harmless and sliced off.
    x_p = (jnp.zeros((batch_pad, in_pad), jnp.bfloat16)
           .at[:batch, :input_dim].set(x.astype(jnp.bfloat16)))

    tiled = lambda i: (i, 0)   # activations stream per batch tile
    const = lambda i: (0, 0)   # weights / biases stay VMEM-resident across tiles

    def const_spec(shape):
        # Constant index map -> single buffer is enough (never re-DMA'd).
        return pl.BlockSpec(shape, const, pipeline_mode=pl.Buffered(1))

    in_specs = [
        pl.BlockSpec((tile_b, in_pad), tiled),          # x (bf16, double-buffered)
        const_spec((in_pad, hidden_pad)),               # w1
        const_spec((1, hidden_pad)),                    # b1
    ]
    args = [x_p, packed["w1"], packed["b1"]]
    for layer in range(num_lstm_layers):
        in_specs.append(const_spec((hidden_pad, 3 * hidden_pad)))   # w_ih [i|g|o]
        in_specs.append(const_spec((1, 3 * hidden_pad)))            # folded bias
        args.append(packed[f"w_ih_{layer}"])
        args.append(packed[f"bias_{layer}"])
    in_specs.append(const_spec((hidden_pad, out_pad)))  # w2
    in_specs.append(const_spec((1, out_pad)))           # b2
    args.append(packed["w2"])
    args.append(packed["b2"])

    # Truthful VMEM budget:
    #   weights/biases: single-buffered (Buffered(1))           -> x1
    #   streamed x (bf16) and out (f32): double-buffered        -> x2
    #   f32 intermediates h + gates (with slack for bf16 copies)
    weight_bytes = sum(a.size * a.dtype.itemsize for a in args[1:])
    stream_bytes = 2 * tile_b * (in_pad * 2 + out_pad * 4)
    interm_bytes = 2 * tile_b * (4 * hidden_pad) * 4
    need = weight_bytes + stream_bytes + interm_bytes + (4 << 20)

    cp_kwargs = dict(dimension_semantics=("parallel",))
    # v5e scoped-VMEM default is 16 MiB (v6e/v7x: 32 MiB) -> raise past 16 MiB.
    if need > (16 << 20):
        cp_kwargs["vmem_limit_bytes"] = int(min(need, 128 << 20))

    # Advisory cost estimate so XLA schedules surrounding ops (padding/cast)
    # sensibly around the custom call.
    flops = 2 * batch_pad * (in_pad * hidden_pad
                             + num_lstm_layers * hidden_pad * 3 * hidden_pad
                             + hidden_pad * out_pad)
    transcendentals = 4 * batch_pad * hidden_pad * num_lstm_layers
    bytes_accessed = (x_p.size * x_p.dtype.itemsize
                      + weight_bytes
                      + batch_pad * out_pad * 4)
    cost = pl.CostEstimate(flops=flops, transcendentals=transcendentals,
                           bytes_accessed=bytes_accessed)

    ew_dtype = jnp.bfloat16 if _bf16_elementwise_ok() else jnp.float32

    out_p = pl.pallas_call(
        _make_kernel(num_lstm_layers, hidden_pad, ew_dtype),
        out_shape=jax.ShapeDtypeStruct((batch_pad, out_pad), jnp.float32),
        grid=grid,
        in_specs=in_specs,
        out_specs=pl.BlockSpec((tile_b, out_pad), tiled),
        compiler_params=pltpu.CompilerParams(**cp_kwargs),
        cost_estimate=cost,
    )(*args)

    return out_p[:batch, :output_dim]


# --------------------------------------------------------------------------- #
# Parameters: PyTorch-layout synthetic init + kernel-layout packing
# --------------------------------------------------------------------------- #
def init_params_torch_layout(key, input_dim, hidden_dim, output_dim, num_lstm_layers):
    """Deterministic synthetic parameters in PyTorch's native layout."""
    keys = jax.random.split(key, 4 + 3 * num_lstm_layers)
    s = 0.1
    p = {
        "fc1.weight": s * jax.random.normal(keys[0], (hidden_dim, input_dim), jnp.float32),
        "fc1.bias":   s * jax.random.normal(keys[1], (hidden_dim,), jnp.float32),
        "fc2.weight": s * jax.random.normal(keys[2], (output_dim, hidden_dim), jnp.float32),
        "fc2.bias":   s * jax.random.normal(keys[3], (output_dim,), jnp.float32),
    }
    for l in range(num_lstm_layers):
        k = keys[4 + 3 * l: 7 + 3 * l]
        # PyTorch gate order in weight_ih / bias_ih / bias_hh: [i | f | g | o].
        p[f"lstm{l}.weight_ih"] = s * jax.random.normal(
            k[0], (4 * hidden_dim, hidden_dim), jnp.float32)
        p[f"lstm{l}.bias_ih"] = s * jax.random.normal(k[1], (4 * hidden_dim,), jnp.float32)
        p[f"lstm{l}.bias_hh"] = s * jax.random.normal(k[2], (4 * hidden_dim,), jnp.float32)
        # weight_hh is never used: h0 == 0 and seq_len == 1, so it contributes nothing.
    return p


def pack_params(p, input_dim, hidden_dim, output_dim, num_lstm_layers,
                weight_dtype=jnp.bfloat16):
    """Pad dims to 128, transpose to (in, out), drop the forget gate, fold biases."""
    in_pad = _round_up(input_dim, LANE)
    h_pad = _round_up(hidden_dim, LANE)
    out_pad = _round_up(output_dim, LANE)
    H = hidden_dim

    def pad2(a, rows, cols):
        return jnp.zeros((rows, cols), jnp.float32).at[:a.shape[0], :a.shape[1]].set(a)

    packed = {
        "w1": pad2(p["fc1.weight"].T, in_pad, h_pad).astype(weight_dtype),
        "b1": pad2(p["fc1.bias"][None, :], 1, h_pad),
        "w2": pad2(p["fc2.weight"].T, h_pad, out_pad).astype(weight_dtype),
        "b2": pad2(p["fc2.bias"][None, :], 1, out_pad),
    }
    for l in range(num_lstm_layers):
        w = p[f"lstm{l}.weight_ih"]                               # (4H, H), [i|f|g|o]
        b = p[f"lstm{l}.bias_ih"] + p[f"lstm{l}.bias_hh"]
        gate_rows = [slice(0, H), slice(2 * H, 3 * H), slice(3 * H, 4 * H)]  # i, g, o
        w_blocks = [pad2(w[r].T, h_pad, h_pad) for r in gate_rows]
        b_blocks = [pad2(b[r][None, :], 1, h_pad) for r in gate_rows]
        packed[f"w_ih_{l}"] = jnp.concatenate(w_blocks, axis=1).astype(weight_dtype)
        packed[f"bias_{l}"] = jnp.concatenate(b_blocks, axis=1)
    return packed


def reference_forward(x, p, *, hidden_dim, num_lstm_layers):
    """Pure-JAX f32 reference of the exact PyTorch forward (zero state, seq_len 1)."""
    H = hidden_dim
    h = jnp.maximum(x @ p["fc1.weight"].T + p["fc1.bias"], 0.0)
    c0 = jnp.zeros_like(h)
    for l in range(num_lstm_layers):
        gates = (h @ p[f"lstm{l}.weight_ih"].T
                 + p[f"lstm{l}.bias_ih"] + p[f"lstm{l}.bias_hh"])
        i = jax.nn.sigmoid(gates[:, 0:H])
        f = jax.nn.sigmoid(gates[:, H:2 * H])
        g = jnp.tanh(gates[:, 2 * H:3 * H])
        o = jax.nn.sigmoid(gates[:, 3 * H:4 * H])
        c = f * c0 + i * g
        h = o * jnp.tanh(c)
    return h @ p["fc2.weight"].T + p["fc2.bias"]


# --------------------------------------------------------------------------- #
# Smoke test
# --------------------------------------------------------------------------- #
if __name__ == "__main__":
    batch = 2
    input_dim = 16
    hidden_dim = 32
    output_dim = 8
    num_lstm_layers = 2

    key = jax.random.PRNGKey(0)
    key_x, key_p = jax.random.split(key)
    x = jax.random.normal(key_x, (batch, input_dim), jnp.float32)

    torch_params = init_params_torch_layout(
        key_p, input_dim, hidden_dim, output_dim, num_lstm_layers)
    packed = pack_params(
        torch_params, input_dim, hidden_dim, output_dim, num_lstm_layers)

    fwd = jax.jit(functools.partial(
        comment_classifier_forward,
        num_lstm_layers=num_lstm_layers,
        output_dim=output_dim,
    ))
    out = jax.block_until_ready(fwd(x, packed))

    ref = reference_forward(
        x, torch_params, hidden_dim=hidden_dim, num_lstm_layers=num_lstm_layers)
    assert out.shape == (batch, output_dim), out.shape
    # bf16 weights (and bf16 gate nonlinearities on v6e/v7x) vs f32 reference.
    err = float(jnp.max(jnp.abs(out - ref)))
    assert jnp.allclose(out, ref, atol=2e-2, rtol=2e-2), err

    print("KERNEL_OK")
</pallas_src>

<mosaic_0001>
module attributes {stable_mosaic.version = 11 : i64} {
  func.func @kernel(%arg0: i32, %arg1: memref<16x128xbf16, #tpu.memory_space<vmem>>, %arg2: memref<128x128xbf16, #tpu.memory_space<vmem>>, %arg3: memref<1x128xf32, #tpu.memory_space<vmem>>, %arg4: memref<128x384xbf16, #tpu.memory_space<vmem>>, %arg5: memref<1x384xf32, #tpu.memory_space<vmem>>, %arg6: memref<128x384xbf16, #tpu.memory_space<vmem>>, %arg7: memref<1x384xf32, #tpu.memory_space<vmem>>, %arg8: memref<128x128xbf16, #tpu.memory_space<vmem>>, %arg9: memref<1x128xf32, #tpu.memory_space<vmem>>, %arg10: memref<16x128xf32, #tpu.memory_space<vmem>>) attributes {dimension_semantics = [#tpu.dimension_semantics<parallel>], iteration_bounds = array<i64: 1>, scalar_prefetch = 0 : i64, scratch_operands = 0 : i64, tpu.core_type = #tpu.core_type<tc>, window_params = [{transform_indices = @transform_0, window_bounds = array<i64: 16, 128>}, {pipeline_mode = #tpu.pipeline_mode<synchronous>, transform_indices = @transform_1, window_bounds = array<i64: 128, 128>}, {pipeline_mode = #tpu.pipeline_mode<synchronous>, transform_indices = @transform_2, window_bounds = array<i64: 1, 128>}, {pipeline_mode = #tpu.pipeline_mode<synchronous>, transform_indices = @transform_3, window_bounds = array<i64: 128, 384>}, {pipeline_mode = #tpu.pipeline_mode<synchronous>, transform_indices = @transform_4, window_bounds = array<i64: 1, 384>}, {pipeline_mode = #tpu.pipeline_mode<synchronous>, transform_indices = @transform_5, window_bounds = array<i64: 128, 384>}, {pipeline_mode = #tpu.pipeline_mode<synchronous>, transform_indices = @transform_6, window_bounds = array<i64: 1, 384>}, {pipeline_mode = #tpu.pipeline_mode<synchronous>, transform_indices = @transform_7, window_bounds = array<i64: 128, 128>}, {pipeline_mode = #tpu.pipeline_mode<synchronous>, transform_indices = @transform_8, window_bounds = array<i64: 1, 128>}, {transform_indices = @transform_9, window_bounds = array<i64: 16, 128>}]} {
    %c0 = arith.constant 0 : index
    %c0_0 = arith.constant 0 : index
    %0 = vector.load %arg1[%c0, %c0_0] : memref<16x128xbf16, #tpu.memory_space<vmem>>, vector<16x128xbf16>
    %c0_1 = arith.constant 0 : index
    %c0_2 = arith.constant 0 : index
    %1 = vector.load %arg2[%c0_1, %c0_2] : memref<128x128xbf16, #tpu.memory_space<vmem>>, vector<128x128xbf16>
    %cst = arith.constant dense<0.000000e+00> : vector<16x128xf32>
    %2 = tpu.matmul %0, %1, %cst {dimension_numbers = #tpu.dot_dimension_numbers<[1], [0], [0], [1], [0, 0, 1, 1], [], []>} : vector<16x128xbf16>, vector<128x128xbf16>, vector<16x128xf32> -> vector<16x128xf32>
    %c0_3 = arith.constant 0 : index
    %c0_4 = arith.constant 0 : index
    %3 = vector.load %arg3[%c0_3, %c0_4] : memref<1x128xf32, #tpu.memory_space<vmem>>, vector<1x128xf32>
    %4 = vector.broadcast %3 : vector<1x128xf32> to vector<16x128xf32>
    %5 = arith.addf %2, %4 : vector<16x128xf32>
    %cst_5 = arith.constant 0.000000e+00 : f32
    %6 = vector.broadcast %cst_5 : f32 to vector<16x128xf32>
    %7 = arith.maximumf %5, %6 : vector<16x128xf32>
    %c0_6 = arith.constant 0 : index
    %c0_7 = arith.constant 0 : index
    %8 = vector.load %arg5[%c0_6, %c0_7] : memref<1x384xf32, #tpu.memory_space<vmem>>, vector<1x384xf32>
    %9 = arith.truncf %7 : vector<16x128xf32> to vector<16x128xbf16>
    %c0_8 = arith.constant 0 : index
    %c0_9 = arith.constant 0 : index
    %10 = vector.load %arg4[%c0_8, %c0_9] : memref<128x384xbf16, #tpu.memory_space<vmem>>, vector<128x384xbf16>
    %cst_10 = arith.constant dense<0.000000e+00> : vector<16x384xf32>
    %11 = tpu.matmul %9, %10, %cst_10 {dimension_numbers = #tpu.dot_dimension_numbers<[1], [0], [0], [1], [0, 0, 1, 1], [], []>} : vector<16x128xbf16>, vector<128x384xbf16>, vector<16x384xf32> -> vector<16x384xf32>
    %12 = vector.broadcast %8 : vector<1x384xf32> to vector<16x384xf32>
    %13 = arith.addf %11, %12 : vector<16x384xf32>
    %14 = arith.truncf %13 : vector<16x384xf32> to vector<16x384xbf16>
    %15 = vector.extract_strided_slice %14 {offsets = [0, 0], sizes = [16, 128], strides = [1, 1]} : vector<16x384xbf16> to vector<16x128xbf16>
    %16 = arith.negf %15 : vector<16x128xbf16>
    %17 = math.exp %16 : vector<16x128xbf16>
    %cst_11 = arith.constant 1.000000e+00 : bf16
    %18 = vector.broadcast %cst_11 : bf16 to vector<16x128xbf16>
    %19 = arith.addf %18, %17 : vector<16x128xbf16>
    %20 = arith.divf %18, %19 : vector<16x128xbf16>
    %21 = vector.extract_strided_slice %14 {offsets = [0, 128], sizes = [16, 128], strides = [1, 1]} : vector<16x384xbf16> to vector<16x128xbf16>
    %22 = math.tanh %21 : vector<16x128xbf16>
    %23 = vector.extract_strided_slice %14 {offsets = [0, 256], sizes = [16, 128], strides = [1, 1]} : vector<16x384xbf16> to vector<16x128xbf16>
    %24 = arith.negf %23 : vector<16x128xbf16>
    %25 = math.exp %24 : vector<16x128xbf16>
    %cst_12 = arith.constant 1.000000e+00 : bf16
    %26 = vector.broadcast %cst_12 : bf16 to vector<16x128xbf16>
    %27 = arith.addf %26, %25 : vector<16x128xbf16>
    %28 = arith.divf %26, %27 : vector<16x128xbf16>
    %29 = arith.mulf %20, %22 : vector<16x128xbf16>
    %30 = math.tanh %29 : vector<16x128xbf16>
    %31 = arith.mulf %28, %30 : vector<16x128xbf16>
    %c0_13 = arith.constant 0 : index
    %c0_14 = arith.constant 0 : index
    %32 = vector.load %arg7[%c0_13, %c0_14] : memref<1x384xf32, #tpu.memory_space<vmem>>, vector<1x384xf32>
    %c0_15 = arith.constant 0 : index
    %c0_16 = arith.constant 0 : index
    %33 = vector.load %arg6[%c0_15, %c0_16] : memref<128x384xbf16, #tpu.memory_space<vmem>>, vector<128x384xbf16>
    %cst_17 = arith.constant dense<0.000000e+00> : vector<16x384xf32>
    %34 = tpu.matmul %31, %33, %cst_17 {dimension_numbers = #tpu.dot_dimension_numbers<[1], [0], [0], [1], [0, 0, 1, 1], [], []>} : vector<16x128xbf16>, vector<128x384xbf16>, vector<16x384xf32> -> vector<16x384xf32>
    %35 = vector.broadcast %32 : vector<1x384xf32> to vector<16x384xf32>
    %36 = arith.addf %34, %35 : vector<16x384xf32>
    %37 = arith.truncf %36 : vector<16x384xf32> to vector<16x384xbf16>
    %38 = vector.extract_strided_slice %37 {offsets = [0, 0], sizes = [16, 128], strides = [1, 1]} : vector<16x384xbf16> to vector<16x128xbf16>
    %39 = arith.negf %38 : vector<16x128xbf16>
    %40 = math.exp %39 : vector<16x128xbf16>
    %cst_18 = arith.constant 1.000000e+00 : bf16
    %41 = vector.broadcast %cst_18 : bf16 to vector<16x128xbf16>
    %42 = arith.addf %41, %40 : vector<16x128xbf16>
    %43 = arith.divf %41, %42 : vector<16x128xbf16>
    %44 = vector.extract_strided_slice %37 {offsets = [0, 128], sizes = [16, 128], strides = [1, 1]} : vector<16x384xbf16> to vector<16x128xbf16>
    %45 = math.tanh %44 : vector<16x128xbf16>
    %46 = vector.extract_strided_slice %37 {offsets = [0, 256], sizes = [16, 128], strides = [1, 1]} : vector<16x384xbf16> to vector<16x128xbf16>
    %47 = arith.negf %46 : vector<16x128xbf16>
    %48 = math.exp %47 : vector<16x128xbf16>
    %cst_19 = arith.constant 1.000000e+00 : bf16
    %49 = vector.broadcast %cst_19 : bf16 to vector<16x128xbf16>
    %50 = arith.addf %49, %48 : vector<16x128xbf16>
    %51 = arith.divf %49, %50 : vector<16x128xbf16>
    %52 = arith.mulf %43, %45 : vector<16x128xbf16>
    %53 = math.tanh %52 : vector<16x128xbf16>
    %54 = arith.mulf %51, %53 : vector<16x128xbf16>
    %c0_20 = arith.constant 0 : index
    %c0_21 = arith.constant 0 : index
    %55 = vector.load %arg8[%c0_20, %c0_21] : memref<128x128xbf16, #tpu.memory_space<vmem>>, vector<128x128xbf16>
    %cst_22 = arith.constant dense<0.000000e+00> : vector<16x128xf32>
    %56 = tpu.matmul %54, %55, %cst_22 {dimension_numbers = #tpu.dot_dimension_numbers<[1], [0], [0], [1], [0, 0, 1, 1], [], []>} : vector<16x128xbf16>, vector<128x128xbf16>, vector<16x128xf32> -> vector<16x128xf32>
    %c0_23 = arith.constant 0 : index
    %c0_24 = arith.constant 0 : index
    %57 = vector.load %arg9[%c0_23, %c0_24] : memref<1x128xf32, #tpu.memory_space<vmem>>, vector<1x128xf32>
    %58 = vector.broadcast %57 : vector<1x128xf32> to vector<16x128xf32>
    %59 = arith.addf %56, %58 : vector<16x128xf32>
    %c0_25 = arith.constant 0 : index
    %c0_26 = arith.constant 0 : index
    %60 = vector.load %arg10[%c0_25, %c0_26] : memref<16x128xf32, #tpu.memory_space<vmem>>, vector<16x128xf32>
    tpu.vector_store %arg10[%c0_25, %c0_26], %59 {strides = array<i32>} : memref<16x128xf32, #tpu.memory_space<vmem>>, vector<16x128xf32>,
    return
  }
  func.func @transform_0(%arg0: i32) -> (i32, i32) {
    %c0_i32 = arith.constant 0 : i32
    %c0_i32_0 = arith.constant 0 : i32
    return %arg0, %c0_i32 : i32, i32
  }
  func.func @transform_1(%arg0: i32) -> (i32, i32) {
    %c0_i32 = arith.constant 0 : i32
    %c0_i32_0 = arith.constant 0 : i32
    %c0_i32_1 = arith.constant 0 : i32
    return %c0_i32, %c0_i32_0 : i32, i32
  }
  func.func @transform_2(%arg0: i32) -> (i32, i32) {
    %c0_i32 = arith.constant 0 : i32
    %c0_i32_0 = arith.constant 0 : i32
    %c0_i32_1 = arith.constant 0 : i32
    return %c0_i32, %c0_i32_0 : i32, i32
  }
  func.func @transform_3(%arg0: i32) -> (i32, i32) {
    %c0_i32 = arith.constant 0 : i32
    %c0_i32_0 = arith.constant 0 : i32
    %c0_i32_1 = arith.constant 0 : i32
    return %c0_i32, %c0_i32_0 : i32, i32
  }
  func.func @transform_4(%arg0: i32) -> (i32, i32) {
    %c0_i32 = arith.constant 0 : i32
    %c0_i32_0 = arith.constant 0 : i32
    %c0_i32_1 = arith.constant 0 : i32
    return %c0_i32, %c0_i32_0 : i32, i32
  }
  func.func @transform_5(%arg0: i32) -> (i32, i32) {
    %c0_i32 = arith.constant 0 : i32
    %c0_i32_0 = arith.constant 0 : i32
    %c0_i32_1 = arith.constant 0 : i32
    return %c0_i32, %c0_i32_0 : i32, i32
  }
  func.func @transform_6(%arg0: i32) -> (i32, i32) {
    %c0_i32 = arith.constant 0 : i32
    %c0_i32_0 = arith.constant 0 : i32
    %c0_i32_1 = arith.constant 0 : i32
    return %c0_i32, %c0_i32_0 : i32, i32
  }
  func.func @transform_7(%arg0: i32) -> (i32, i32) {
    %c0_i32 = arith.constant 0 : i32
    %c0_i32_0 = arith.constant 0 : i32
    %c0_i32_1 = arith.constant 0 : i32
    return %c0_i32, %c0_i32_0 : i32, i32
  }
  func.func @transform_8(%arg0: i32) -> (i32, i32) {
    %c0_i32 = arith.constant 0 : i32
    %c0_i32_0 = arith.constant 0 : i32
    %c0_i32_1 = arith.constant 0 : i32
    return %c0_i32, %c0_i32_0 : i32, i32
  }
  func.func @transform_9(%arg0: i32) -> (i32, i32) {
    %c0_i32 = arith.constant 0 : i32
    %c0_i32_0 = arith.constant 0 : i32
    return %arg0, %c0_i32 : i32, i32
  }
}

</mosaic_0001>

<llo_original>
// kernel: comment_classifier_forward.1
$region0: #{comment_classifier_forward.1}
  #allocation0 [shape = 'u32[]', space=smem, size = 0x4, offset = 0x4, fixed_abs, tag = 'smem constant byte address 0x4 - core index']
  #allocation1 [shape = 'u32[144,128]{1,0:T(1,128)}', space=vmem, size = 0x12000, scoped, tag = 'internal scratch']
  %s0 = inlined_call_operand.vmem [shape: bf16[16,128], index: 0, kind: input, shape index: {}]
  %s1 = inlined_call_operand.hbm [shape: bf16[128,128], index: 1, kind: input, shape index: {}]
  %s2 = inlined_call_operand.vmem [shape: f32[1,128], index: 2, kind: input, shape index: {}]
  %s3 = inlined_call_operand.hbm [shape: bf16[128,384], index: 3, kind: input, shape index: {}]
  %s4 = inlined_call_operand.vmem [shape: f32[1,384], index: 4, kind: input, shape index: {}]
  %s5 = inlined_call_operand.hbm [shape: bf16[128,384], index: 5, kind: input, shape index: {}]
  %s6 = inlined_call_operand.vmem [shape: f32[1,384], index: 6, kind: input, shape index: {}]
  %s7 = inlined_call_operand.hbm [shape: bf16[128,128], index: 7, kind: input, shape index: {}]
  %s8 = inlined_call_operand.vmem [shape: f32[1,128], index: 8, kind: input, shape index: {}]
  %s9 = inlined_call_operand.vmem [shape: f32[16,128], index: 9, kind: output, shape index: {}]
  %s10 = sld [smem:[#allocation0]]
  $region62: #{comment_classifier_forward.1} parent=0
    _
  %s12 = ssub.s32 1, %s10
  %s13 = scalar_select 0, %s12, %s10
  $region1: #{comment_classifier_forward.1} parent=0
    #allocation2 [shape = 'u8[32768]{0}', space=vmem, size = 0x8000, scoped, tag = 'input window, operand 1, single buffered']
    #allocation3 [shape = 's32[1]{0}', space=sflag, size = 0x4, scoped, tag = 'scoped memory for comment_classifier_forward.1']
    #allocation4 [shape = 'u8[98304]{0}', space=vmem, size = 0x18000, scoped, tag = 'input window, operand 3, single buffered']
    #allocation5 [shape = 's32[1]{0}', space=sflag, size = 0x4, scoped, tag = 'scoped memory for comment_classifier_forward.1']
    #allocation6 [shape = 'u8[98304]{0}', space=vmem, size = 0x18000, scoped, tag = 'input window, operand 5, single buffered']
    #allocation7 [shape = 'u8[32768]{0}', space=vmem, size = 0x8000, scoped, tag = 'input window, operand 7, single buffered']
    #allocation8 [shape = 's32[1]{0}', space=sflag, size = 0x4, scoped, tag = 'scoped memory for comment_classifier_forward.1']
    %14 = vsyncpa [#allocation3], 0
    %15 = vsyncpa [#allocation5], 0
    %16 = vsyncpa [#allocation8], 0
    // Predicated region
    $region2: #{comment_classifier_forward.1} parent=1 // pred_check
      _
    $region3: #{comment_classifier_forward.1} parent=1 // pred_check_branch
      %18 = sbr.rel (0) target = $region5
    $region4: #{comment_classifier_forward.1} parent=1 // pred_region
      _
    $region5: #{comment_classifier_forward.1} parent=1 // pred_fallthru
      _
    // Predicated region
    $region6: #{comment_classifier_forward.1} parent=1 // pred_check
      _
    $region7: #{comment_classifier_forward.1} parent=1 // pred_check_branch
      %20 = sbr.rel (0) target = $region9
    $region8: #{comment_classifier_forward.1} parent=1 // pred_region
      %s22 = ssub.s32 1024, 1024
      %23 = vsyncadd [#allocation3], %s22
      %s24 = sshll.u32 [#allocation2], 4
      %s25 = int_to_ptr.vmem [resolvable:$true] %s24
      %30 = dma.hbm_to_vmem [thread:$0]  %s1, 1024, %s25, [#allocation3], 64, 64, 4
    $region9: #{comment_classifier_forward.1} parent=1 // pred_fallthru
      _
    // Predicated region
    $region10: #{comment_classifier_forward.1} parent=1 // pred_check
      _
    $region11: #{comment_classifier_forward.1} parent=1 // pred_check_branch
      %32 = sbr.rel (0) target = $region13
    $region12: #{comment_classifier_forward.1} parent=1 // pred_region
      _
    $region13: #{comment_classifier_forward.1} parent=1 // pred_fallthru
      _
    // Predicated region
    $region14: #{comment_classifier_forward.1} parent=1 // pred_check
      _
    $region15: #{comment_classifier_forward.1} parent=1 // pred_check_branch
      %34 = sbr.rel (0) target = $region17
    $region16: #{comment_classifier_forward.1} parent=1 // pred_region
      %s36 = ssub.s32 3072, 3072
      %37 = vsyncadd [#allocation5], %s36
      %s38 = sshll.u32 [#allocation4], 4
      %s39 = int_to_ptr.vmem [resolvable:$true] %s38
      %44 = dma.hbm_to_vmem [thread:$0]  %s3, 3072, %s39, [#allocation5], 192, 192, 12
    $region17: #{comment_classifier_forward.1} parent=1 // pred_fallthru
      _
    // Predicated region
    $region18: #{comment_classifier_forward.1} parent=1 // pred_check
      _
    $region19: #{comment_classifier_forward.1} parent=1 // pred_check_branch
      %46 = sbr.rel (0) target = $region21
    $region20: #{comment_classifier_forward.1} parent=1 // pred_region
      _
    $region21: #{comment_classifier_forward.1} parent=1 // pred_fallthru
      _
    // Predicated region
    $region22: #{comment_classifier_forward.1} parent=1 // pred_check
      _
    $region23: #{comment_classifier_forward.1} parent=1 // pred_check_branch
      %48 = sbr.rel (0) target = $region25
    $region24: #{comment_classifier_forward.1} parent=1 // pred_region
      %s50 = ssub.s32 3072, 3072
      %51 = vsyncadd [#allocation5], %s50
      %s52 = sshll.u32 [#allocation6], 4
      %s53 = int_to_ptr.vmem [resolvable:$true] %s52
      %58 = dma.hbm_to_vmem [thread:$0]  %s5, 3072, %s53, [#allocation5], 192, 192, 12
    $region25: #{comment_classifier_forward.1} parent=1 // pred_fallthru
      _
    // Predicated region
    $region26: #{comment_classifier_forward.1} parent=1 // pred_check
      _
    $region27: #{comment_classifier_forward.1} parent=1 // pred_check_branch
      %60 = sbr.rel (0) target = $region29
    $region28: #{comment_classifier_forward.1} parent=1 // pred_region
      _
    $region29: #{comment_classifier_forward.1} parent=1 // pred_fallthru
      _
    // Predicated region
    $region30: #{comment_classifier_forward.1} parent=1 // pred_check
      _
    $region31: #{comment_classifier_forward.1} parent=1 // pred_check_branch
      %62 = sbr.rel (0) target = $region33
    $region32: #{comment_classifier_forward.1} parent=1 // pred_region
      %s64 = ssub.s32 1024, 1024
      %65 = vsyncadd [#allocation8], %s64
      %s66 = sshll.u32 [#allocation7], 4
      %s67 = int_to_ptr.vmem [resolvable:$true] %s66
      %72 = dma.hbm_to_vmem [thread:$0]  %s7, 1024, %s67, [#allocation8], 64, 64, 4
    $region33: #{comment_classifier_forward.1} parent=1 // pred_fallthru
      _
    // Predicated region
    $region34: #{comment_classifier_forward.1} parent=1 // pred_check
      _
    $region35: #{comment_classifier_forward.1} parent=1 // pred_check_branch
      %74 = sbr.rel (0) target = $region37
    $region36: #{comment_classifier_forward.1} parent=1 // pred_region
      _
    $region37: #{comment_classifier_forward.1} parent=1 // pred_fallthru
      _
    // Predicated region
    $region38: #{comment_classifier_forward.1} parent=1 // pred_check
      _
    $region39: #{comment_classifier_forward.1} parent=1 // pred_check_branch
      %76 = sbr.rel (0) target = $region41
    $region40: #{comment_classifier_forward.1} parent=1 // pred_region
      %77 = dma.done [#allocation3], 1024
    $region41: #{comment_classifier_forward.1} parent=1 // pred_fallthru
      _
    // Predicated region
    $region42: #{comment_classifier_forward.1} parent=1 // pred_check
      _
    $region43: #{comment_classifier_forward.1} parent=1 // pred_check_branch
      %79 = sbr.rel (0) target = $region45
    $region44: #{comment_classifier_forward.1} parent=1 // pred_region
      %80 = dma.done [#allocation5], 3072
    $region45: #{comment_classifier_forward.1} parent=1 // pred_fallthru
      _
    // Predicated region
    $region46: #{comment_classifier_forward.1} parent=1 // pred_check
      _
    $region47: #{comment_classifier_forward.1} parent=1 // pred_check_branch
      %82 = sbr.rel (0) target = $region49
    $region48: #{comment_classifier_forward.1} parent=1 // pred_region
      %83 = dma.done [#allocation5], 3072
    $region49: #{comment_classifier_forward.1} parent=1 // pred_fallthru
      _
    // Predicated region
    $region50: #{comment_classifier_forward.1} parent=1 // pred_check
      _
    $region51: #{comment_classifier_forward.1} parent=1 // pred_check_branch
      %85 = sbr.rel (0) target = $region53
    $region52: #{comment_classifier_forward.1} parent=1 // pred_region
      %86 = dma.done [#allocation8], 1024
    $region53: #{comment_classifier_forward.1} parent=1 // pred_fallthru
      _
    %v89 = vld [vmem:[%s0] sm:$0xf]
    %v90 = vld [vmem:[%s0 + $0x4] sm:$0xf]
    %v91 = vld [vmem:[#allocation2] sm:$0xf]
    %v92 = vld [vmem:[#allocation2 + $0x4] sm:$0xf]
    %v93 = vld [vmem:[#allocation2 + $0x8] sm:$0xf]
    %v94 = vld [vmem:[#allocation2 + $0xc] sm:$0xf]
    %v95 = vld [vmem:[#allocation2 + $0x10] sm:$0xf]
    %v96 = vld [vmem:[#allocation2 + $0x14] sm:$0xf]
    %v97 = vld [vmem:[#allocation2 + $0x18] sm:$0xf]
    %v98 = vld [vmem:[#allocation2 + $0x1c] sm:$0xf]
    %v99 = vld [vmem:[#allocation2 + $0x20] sm:$0xf]
    %v100 = vld [vmem:[#allocation2 + $0x24] sm:$0xf]
    %v101 = vld [vmem:[#allocation2 + $0x28] sm:$0xf]
    %v102 = vld [vmem:[#allocation2 + $0x2c] sm:$0xf]
    %v103 = vld [vmem:[#allocation2 + $0x30] sm:$0xf]
    %v104 = vld [vmem:[#allocation2 + $0x34] sm:$0xf]
    %v105 = vld [vmem:[#allocation2 + $0x38] sm:$0xf]
    %v106 = vld [vmem:[#allocation2 + $0x3c] sm:$0xf]
    %v107 = vld [vmem:[%s2] sm:$0x1]
    %v109 = vlaneseq
    %v110 = vshrl.u32 %v109, 7
    %v111 = vsub.s32 0, %v110
    %v112 = vrot.slane %v107, %v111
    %v116 = vunpack.c.l.b16 %v89
    %v117 = vunpack.c.l.b16 %v90
    %v118 = vpack.c.b16 %v117, %v116
    %v136 = vunpack.c.l.b16 %v91
    %v137 = vunpack.c.l.b16 %v92
    %v138 = vunpack.c.l.b16 %v93
    %v139 = vunpack.c.l.b16 %v94
    %v140 = vunpack.c.l.b16 %v95
    %v141 = vunpack.c.l.b16 %v96
    %v142 = vunpack.c.l.b16 %v97
    %v143 = vunpack.c.l.b16 %v98
    %v144 = vunpack.c.l.b16 %v99
    %v145 = vunpack.c.l.b16 %v100
    %v146 = vunpack.c.l.b16 %v101
    %v147 = vunpack.c.l.b16 %v102
    %v148 = vunpack.c.l.b16 %v103
    %v149 = vunpack.c.l.b16 %v104
    %v150 = vunpack.c.l.b16 %v105
    %v151 = vunpack.c.l.b16 %v106
    %v152 = vpack.c.b16 %v137, %v136
    %v153 = vpack.c.b16 %v139, %v138
    %v154 = vpack.c.b16 %v141, %v140
    %v155 = vpack.c.b16 %v143, %v142
    %v156 = vpack.c.b16 %v145, %v144
    %v157 = vpack.c.b16 %v147, %v146
    %v158 = vpack.c.b16 %v149, %v148
    %v159 = vpack.c.b16 %v151, %v150
    %168 = vmatprep.subr.bf16.mxu0 0
    %169 = vmatpush1.bf16.msra.mxu0 %v152
    %170 = vmatprep.subr.bf16.mxu0 0
    %171 = vmatpush1.bf16.msra.mxu0 %v153
    %172 = vmatprep.subr.bf16.mxu0 0
    %173 = vmatpush1.bf16.msra.mxu0 %v154
    %174 = vmatprep.subr.bf16.mxu0 0
    %175 = vmatpush1.bf16.msra.mxu0 %v155
    %176 = vmatprep.subr.bf16.mxu0 0
    %177 = vmatpush1.bf16.msra.mxu0 %v156
    %178 = vmatprep.subr.bf16.mxu0 0
    %179 = vmatpush1.bf16.msra.mxu0 %v157
    %180 = vmatprep.subr.bf16.mxu0 0
    %181 = vmatpush1.bf16.msra.mxu0 %v158
    %182 = vmatprep.subr.bf16.mxu0 0
    %183 = vmatpush1.bf16.msra.mxu0 %v159
    %184 = vmatprep.subr.bf16.mxu0 0
    %185 = vmatpush1.bf16.msra.mxu0 0
    %186 = vmatprep.subr.bf16.mxu0 0
    %187 = vmatpush1.bf16.msra.mxu0 0
    %188 = vmatprep.subr.bf16.mxu0 0
    %189 = vmatpush1.bf16.msra.mxu0 0
    %190 = vmatprep.subr.bf16.mxu0 0
    %191 = vmatpush1.bf16.msra.mxu0 0
    %192 = vmatprep.subr.bf16.mxu0 0
    %193 = vmatpush1.bf16.msra.mxu0 0
    %194 = vmatprep.subr.bf16.mxu0 0
    %195 = vmatpush1.bf16.msra.mxu0 0
    %196 = vmatprep.subr.bf16.mxu0 0
    %197 = vmatpush1.bf16.msra.mxu0 0
    %198 = vmatprep.subr.bf16.mxu0 0
    %199 = vmatpush1.bf16.msra.mxu0 0
    %200 = vmatprep.mubr.bf16.mxu0 0
    %201 = vmatmul.mubr.bf16.gmra.mrb[0].mxu0 %v118
    %v202 = vpop.f32.mrb[0].mxu0
    %v203 = vadd.f32 %v112, %v202
    %v204 = vpop.f32.mrb[0].mxu0
    %v205 = vpop.f32.mrb[0].mxu0
    %v206 = vadd.f32 %v112, %v205
    %v207 = vpop.f32.mrb[0].mxu0
    %208 = vdwg.mxu0
    %v209 = vmax.f32 %v203, 0.0
    %v210 = vmax.f32 %v206, 0.0
    %v211 = vld [vmem:[%s4] sm:$0x7]
    %v212 = vpack.c.bf16 %v210, %v209
    %v213 = vld [vmem:[#allocation4] sm:$0xff]
    %v214 = vld [vmem:[#allocation4 + $0x8] sm:$0xf]
    %v215 = vld [vmem:[#allocation4 + $0xc] sm:$0xff]
    %v216 = vld [vmem:[#allocation4 + $0x14] sm:$0xf]
    %v217 = vld [vmem:[#allocation4 + $0x18] sm:$0xff]
    %v218 = vld [vmem:[#allocation4 + $0x20] sm:$0xf]
    %v219 = vld [vmem:[#allocation4 + $0x24] sm:$0xff]
    %v220 = vld [vmem:[#allocation4 + $0x2c] sm:$0xf]
    %v221 = vld [vmem:[#allocation4 + $0x30] sm:$0xff]
    %v222 = vld [vmem:[#allocation4 + $0x38] sm:$0xf]
    %v223 = vld [vmem:[#allocation4 + $0x3c] sm:$0xff]
    %v224 = vld [vmem:[#allocation4 + $0x44] sm:$0xf]
    %v225 = vld [vmem:[#allocation4 + $0x48] sm:$0xff]
    %v226 = vld [vmem:[#allocation4 + $0x50] sm:$0xf]
    %v227 = vld [vmem:[#allocation4 + $0x54] sm:$0xff]
    %v228 = vld [vmem:[#allocation4 + $0x5c] sm:$0xf]
    %v229 = vld [vmem:[#allocation4 + $0x60] sm:$0xff]
    %v230 = vld [vmem:[#allocation4 + $0x68] sm:$0xf]
    %v231 = vld [vmem:[#allocation4 + $0x6c] sm:$0xff]
    %v232 = vld [vmem:[#allocation4 + $0x74] sm:$0xf]
    %v233 = vld [vmem:[#allocation4 + $0x78] sm:$0xff]
    %v234 = vld [vmem:[#allocation4 + $0x80] sm:$0xf]
    %v235 = vld [vmem:[#allocation4 + $0x84] sm:$0xff]
    %v236 = vld [vmem:[#allocation4 + $0x8c] sm:$0xf]
    %v237 = vld [vmem:[#allocation4 + $0x90] sm:$0xff]
    %v238 = vld [vmem:[#allocation4 + $0x98] sm:$0xf]
    %v239 = vld [vmem:[#allocation4 + $0x9c] sm:$0xff]
    %v240 = vld [vmem:[#allocation4 + $0xa4] sm:$0xf]
    %v241 = vld [vmem:[#allocation4 + $0xa8] sm:$0xff]
    %v242 = vld [vmem:[#allocation4 + $0xb0] sm:$0xf]
    %v243 = vld [vmem:[#allocation4 + $0xb4] sm:$0xff]
    %v244 = vld [vmem:[#allocation4 + $0xbc] sm:$0xf]
    %v246 = vlaneseq
    %v247 = vshrl.u32 %v246, 7
    %v248 = vsub.s32 0, %v247
    %v249 = vrot.slane %v211, %v248
    %v250 = vlaneseq
    %v251 = vshrl.u32 %v250, 7
    %v252 = vsub.s32 1, %v251
    %v253 = vrot.slane %v211, %v252
    %v254 = vlaneseq
    %v255 = vshrl.u32 %v254, 7
    %v256 = vsub.s32 2, %v255
    %v257 = vrot.slane %v211, %v256
    %v293 = vunpack.c.l.b16 %v213
    %v294 = vunpack.c.h.b16 %v213
    %v295 = vunpack.c.l.b16 %v214
    %v296 = vunpack.c.l.b16 %v215
    %v297 = vunpack.c.h.b16 %v215
    %v298 = vunpack.c.l.b16 %v216
    %v299 = vunpack.c.l.b16 %v217
    %v300 = vunpack.c.h.b16 %v217
    %v301 = vunpack.c.l.b16 %v218
    %v302 = vunpack.c.l.b16 %v219
    %v303 = vunpack.c.h.b16 %v219
    %v304 = vunpack.c.l.b16 %v220
    %v305 = vunpack.c.l.b16 %v221
    %v306 = vunpack.c.h.b16 %v221
    %v307 = vunpack.c.l.b16 %v222
    %v308 = vunpack.c.l.b16 %v223
    %v309 = vunpack.c.h.b16 %v223
    %v310 = vunpack.c.l.b16 %v224
    %v311 = vunpack.c.l.b16 %v225
    %v312 = vunpack.c.h.b16 %v225
    %v313 = vunpack.c.l.b16 %v226
    %v314 = vunpack.c.l.b16 %v227
    %v315 = vunpack.c.h.b16 %v227
    %v316 = vunpack.c.l.b16 %v228
    %v317 = vunpack.c.l.b16 %v229
    %v318 = vunpack.c.h.b16 %v229
    %v319 = vunpack.c.l.b16 %v230
    %v320 = vunpack.c.l.b16 %v231
    %v321 = vunpack.c.h.b16 %v231
    %v322 = vunpack.c.l.b16 %v232
    %v323 = vunpack.c.l.b16 %v233
    %v324 = vunpack.c.h.b16 %v233
    %v325 = vunpack.c.l.b16 %v234
    %v326 = vunpack.c.l.b16 %v235
    %v327 = vunpack.c.h.b16 %v235
    %v328 = vunpack.c.l.b16 %v236
    %v329 = vunpack.c.l.b16 %v237
    %v330 = vunpack.c.h.b16 %v237
    %v331 = vunpack.c.l.b16 %v238
    %v332 = vunpack.c.l.b16 %v239
    %v333 = vunpack.c.h.b16 %v239
    %v334 = vunpack.c.l.b16 %v240
    %v335 = vunpack.c.l.b16 %v241
    %v336 = vunpack.c.h.b16 %v241
    %v337 = vunpack.c.l.b16 %v242
    %v338 = vunpack.c.l.b16 %v243
    %v339 = vunpack.c.h.b16 %v243
    %v340 = vunpack.c.l.b16 %v244
    %v341 = vpack.c.b16 %v296, %v293
    %v342 = vpack.c.b16 %v297, %v294
    %v343 = vpack.c.b16 %v298, %v295
    %v344 = vpack.c.b16 %v302, %v299
    %v345 = vpack.c.b16 %v303, %v300
    %v346 = vpack.c.b16 %v304, %v301
    %v347 = vpack.c.b16 %v308, %v305
    %v348 = vpack.c.b16 %v309, %v306
    %v349 = vpack.c.b16 %v310, %v307
    %v350 = vpack.c.b16 %v314, %v311
    %v351 = vpack.c.b16 %v315, %v312
    %v352 = vpack.c.b16 %v316, %v313
    %v353 = vpack.c.b16 %v320, %v317
    %v354 = vpack.c.b16 %v321, %v318
    %v355 = vpack.c.b16 %v322, %v319
    %v356 = vpack.c.b16 %v326, %v323
    %v357 = vpack.c.b16 %v327, %v324
    %v358 = vpack.c.b16 %v328, %v325
    %v359 = vpack.c.b16 %v332, %v329
    %v360 = vpack.c.b16 %v333, %v330
    %v361 = vpack.c.b16 %v334, %v331
    %v362 = vpack.c.b16 %v338, %v335
    %v363 = vpack.c.b16 %v339, %v336
    %v364 = vpack.c.b16 %v340, %v337
    %389 = vmatprep.subr.bf16.mxu0 %v342
    %390 = vmatpush1.bf16.msra.mxu0 %v341
    %391 = vmatprep.subr.bf16.mxu0 %v345
    %392 = vmatpush1.bf16.msra.mxu0 %v344
    %393 = vmatprep.subr.bf16.mxu0 %v348
    %394 = vmatpush1.bf16.msra.mxu0 %v347
    %395 = vmatprep.subr.bf16.mxu0 %v351
    %396 = vmatpush1.bf16.msra.mxu0 %v350
    %397 = vmatprep.subr.bf16.mxu0 %v354
    %398 = vmatpush1.bf16.msra.mxu0 %v353
    %399 = vmatprep.subr.bf16.mxu0 %v357
    %400 = vmatpush1.bf16.msra.mxu0 %v356
    %401 = vmatprep.subr.bf16.mxu0 %v360
    %402 = vmatpush1.bf16.msra.mxu0 %v359
    %403 = vmatprep.subr.bf16.mxu0 %v363
    %404 = vmatpush1.bf16.msra.mxu0 %v362
    %405 = vmatprep.subr.bf16.mxu0 0
    %406 = vmatpush1.bf16.msra.mxu0 0
    %407 = vmatprep.subr.bf16.mxu0 0
    %408 = vmatpush1.bf16.msra.mxu0 0
    %409 = vmatprep.subr.bf16.mxu0 0
    %410 = vmatpush1.bf16.msra.mxu0 0
    %411 = vmatprep.subr.bf16.mxu0 0
    %412 = vmatpush1.bf16.msra.mxu0 0
    %413 = vmatprep.subr.bf16.mxu0 0
    %414 = vmatpush1.bf16.msra.mxu0 0
    %415 = vmatprep.subr.bf16.mxu0 0
    %416 = vmatpush1.bf16.msra.mxu0 0
    %417 = vmatprep.subr.bf16.mxu0 0
    %418 = vmatpush1.bf16.msra.mxu0 0
    %419 = vmatprep.subr.bf16.mxu0 0
    %420 = vmatpush1.bf16.msra.mxu0 0
    %421 = vmatprep.mubr.bf16.mxu0 0
    %422 = vmatmul.mubr.bf16.gmra.mrb[0].mxu0 %v212
    %v423 = vpop.f32.mrb[0].mxu0
    %v424 = vadd.f32 %v249, %v423
    %v425 = vpop.f32.mrb[0].mxu0
    %v426 = vadd.f32 %v253, %v425
    %v427 = vpop.f32.mrb[0].mxu0
    %v428 = vadd.f32 %v249, %v427
    %v429 = vpop.f32.mrb[0].mxu0
    %v430 = vadd.f32 %v253, %v429
    %431 = vdwg.mxu0
    %432 = vmatprep.subr.bf16.mxu0 0
    %433 = vmatpush1.bf16.msra.mxu0 %v343
    %434 = vmatprep.subr.bf16.mxu0 0
    %435 = vmatpush1.bf16.msra.mxu0 %v346
    %436 = vmatprep.subr.bf16.mxu0 0
    %437 = vmatpush1.bf16.msra.mxu0 %v349
    %438 = vmatprep.subr.bf16.mxu0 0
    %439 = vmatpush1.bf16.msra.mxu0 %v352
    %440 = vmatprep.subr.bf16.mxu0 0
    %441 = vmatpush1.bf16.msra.mxu0 %v355
    %442 = vmatprep.subr.bf16.mxu0 0
    %443 = vmatpush1.bf16.msra.mxu0 %v358
    %444 = vmatprep.subr.bf16.mxu0 0
    %445 = vmatpush1.bf16.msra.mxu0 %v361
    %446 = vmatprep.subr.bf16.mxu0 0
    %447 = vmatpush1.bf16.msra.mxu0 %v364
    %448 = vmatprep.subr.bf16.mxu0 0
    %449 = vmatpush1.bf16.msra.mxu0 0
    %450 = vmatprep.subr.bf16.mxu0 0
    %451 = vmatpush1.bf16.msra.mxu0 0
    %452 = vmatprep.subr.bf16.mxu0 0
    %453 = vmatpush1.bf16.msra.mxu0 0
    %454 = vmatprep.subr.bf16.mxu0 0
    %455 = vmatpush1.bf16.msra.mxu0 0
    %456 = vmatprep.subr.bf16.mxu0 0
    %457 = vmatpush1.bf16.msra.mxu0 0
    %458 = vmatprep.subr.bf16.mxu0 0
    %459 = vmatpush1.bf16.msra.mxu0 0
    %460 = vmatprep.subr.bf16.mxu0 0
    %461 = vmatpush1.bf16.msra.mxu0 0
    %462 = vmatprep.subr.bf16.mxu0 0
    %463 = vmatpush1.bf16.msra.mxu0 0
    %464 = vmatprep.mubr.bf16.mxu0 0
    %465 = vmatmul.mubr.bf16.gmra.mrb[0].mxu0 %v212
    %v466 = vpop.f32.mrb[0].mxu0
    %v467 = vadd.f32 %v257, %v466
    %v468 = vpop.f32.mrb[0].mxu0
    %v469 = vpop.f32.mrb[0].mxu0
    %v470 = vadd.f32 %v257, %v469
    %v471 = vpop.f32.mrb[0].mxu0
    %472 = vdwg.mxu0
    %v473 = vpack.c.bf16 %v428, %v424
    %v474 = vpack.c.bf16 %v430, %v426
    %v475 = vpack.c.bf16 %v470, %v467
    %v476 = vxor.u32 %v473, 2147516416
    %v478 = vmul.bf16 %v476, 1069105081
    %v479 = vpow.bf16.pop %v478
    %v480 = vadd.bf16 %v479, 1065369472
    %v481 = vrcp.bf16.pop %v480
    %v482 = vmul.bf16 1065369472, %v481
    %v483 = vtanh.bf16.pop %v474
    %v484 = vxor.u32 %v475, 2147516416
    %v486 = vmul.bf16 %v484, 1069105081
    %v487 = vpow.bf16.pop %v486
    %v488 = vadd.bf16 %v487, 1065369472
    %v489 = vrcp.bf16.pop %v488
    %v490 = vmul.bf16 1065369472, %v489
    %v491 = vmul.bf16 %v482, %v483
    %v492 = vtanh.bf16.pop %v491
    %v493 = vmul.bf16 %v490, %v492
    %v494 = vld [vmem:[%s6] sm:$0x7]
    %v495 = vld [vmem:[#allocation6] sm:$0xff]
    %v496 = vld [vmem:[#allocation6 + $0x8] sm:$0xf]
    %v497 = vld [vmem:[#allocation6 + $0xc] sm:$0xff]
    %v498 = vld [vmem:[#allocation6 + $0x14] sm:$0xf]
    %v499 = vld [vmem:[#allocation6 + $0x18] sm:$0xff]
    %v500 = vld [vmem:[#allocation6 + $0x20] sm:$0xf]
    %v501 = vld [vmem:[#allocation6 + $0x24] sm:$0xff]
    %v502 = vld [vmem:[#allocation6 + $0x2c] sm:$0xf]
    %v503 = vld [vmem:[#allocation6 + $0x30] sm:$0xff]
    %v504 = vld [vmem:[#allocation6 + $0x38] sm:$0xf]
    %v505 = vld [vmem:[#allocation6 + $0x3c] sm:$0xff]
    %v506 = vld [vmem:[#allocation6 + $0x44] sm:$0xf]
    %v507 = vld [vmem:[#allocation6 + $0x48] sm:$0xff]
    %v508 = vld [vmem:[#allocation6 + $0x50] sm:$0xf]
    %v509 = vld [vmem:[#allocation6 + $0x54] sm:$0xff]
    %v510 = vld [vmem:[#allocation6 + $0x5c] sm:$0xf]
    %v511 = vld [vmem:[#allocation6 + $0x60] sm:$0xff]
    %v512 = vld [vmem:[#allocation6 + $0x68] sm:$0xf]
    %v513 = vld [vmem:[#allocation6 + $0x6c] sm:$0xff]
    %v514 = vld [vmem:[#allocation6 + $0x74] sm:$0xf]
    %v515 = vld [vmem:[#allocation6 + $0x78] sm:$0xff]
    %v516 = vld [vmem:[#allocation6 + $0x80] sm:$0xf]
    %v517 = vld [vmem:[#allocation6 + $0x84] sm:$0xff]
    %v518 = vld [vmem:[#allocation6 + $0x8c] sm:$0xf]
    %v519 = vld [vmem:[#allocation6 + $0x90] sm:$0xff]
    %v520 = vld [vmem:[#allocation6 + $0x98] sm:$0xf]
    %v521 = vld [vmem:[#allocation6 + $0x9c] sm:$0xff]
    %v522 = vld [vmem:[#allocation6 + $0xa4] sm:$0xf]
    %v523 = vld [vmem:[#allocation6 + $0xa8] sm:$0xff]
    %v524 = vld [vmem:[#allocation6 + $0xb0] sm:$0xf]
    %v525 = vld [vmem:[#allocation6 + $0xb4] sm:$0xff]
    %v526 = vld [vmem:[#allocation6 + $0xbc] sm:$0xf]
    %v528 = vlaneseq
    %v529 = vshrl.u32 %v528, 7
    %v530 = vsub.s32 0, %v529
    %v531 = vrot.slane %v494, %v530
    %v532 = vlaneseq
    %v533 = vshrl.u32 %v532, 7
    %v534 = vsub.s32 1, %v533
    %v535 = vrot.slane %v494, %v534
    %v536 = vlaneseq
    %v537 = vshrl.u32 %v536, 7
    %v538 = vsub.s32 2, %v537
    %v539 = vrot.slane %v494, %v538
    %v575 = vunpack.c.l.b16 %v495
    %v576 = vunpack.c.h.b16 %v495
    %v577 = vunpack.c.l.b16 %v496
    %v578 = vunpack.c.l.b16 %v497
    %v579 = vunpack.c.h.b16 %v497
    %v580 = vunpack.c.l.b16 %v498
    %v581 = vunpack.c.l.b16 %v499
    %v582 = vunpack.c.h.b16 %v499
    %v583 = vunpack.c.l.b16 %v500
    %v584 = vunpack.c.l.b16 %v501
    %v585 = vunpack.c.h.b16 %v501
    %v586 = vunpack.c.l.b16 %v502
    %v587 = vunpack.c.l.b16 %v503
    %v588 = vunpack.c.h.b16 %v503
    %v589 = vunpack.c.l.b16 %v504
    %v590 = vunpack.c.l.b16 %v505
    %v591 = vunpack.c.h.b16 %v505
    %v592 = vunpack.c.l.b16 %v506
    %v593 = vunpack.c.l.b16 %v507
    %v594 = vunpack.c.h.b16 %v507
    %v595 = vunpack.c.l.b16 %v508
    %v596 = vunpack.c.l.b16 %v509
    %v597 = vunpack.c.h.b16 %v509
    %v598 = vunpack.c.l.b16 %v510
    %v599 = vunpack.c.l.b16 %v511
    %v600 = vunpack.c.h.b16 %v511
    %v601 = vunpack.c.l.b16 %v512
    %v602 = vunpack.c.l.b16 %v513
    %v603 = vunpack.c.h.b16 %v513
    %v604 = vunpack.c.l.b16 %v514
    %v605 = vunpack.c.l.b16 %v515
    %v606 = vunpack.c.h.b16 %v515
    %v607 = vunpack.c.l.b16 %v516
    %v608 = vunpack.c.l.b16 %v517
    %v609 = vunpack.c.h.b16 %v517
    %v610 = vunpack.c.l.b16 %v518
    %v611 = vunpack.c.l.b16 %v519
    %v612 = vunpack.c.h.b16 %v519
    %v613 = vunpack.c.l.b16 %v520
    %v614 = vunpack.c.l.b16 %v521
    %v615 = vunpack.c.h.b16 %v521
    %v616 = vunpack.c.l.b16 %v522
    %v617 = vunpack.c.l.b16 %v523
    %v618 = vunpack.c.h.b16 %v523
    %v619 = vunpack.c.l.b16 %v524
    %v620 = vunpack.c.l.b16 %v525
    %v621 = vunpack.c.h.b16 %v525
    %v622 = vunpack.c.l.b16 %v526
    %v623 = vpack.c.b16 %v578, %v575
    %v624 = vpack.c.b16 %v579, %v576
    %v625 = vpack.c.b16 %v580, %v577
    %v626 = vpack.c.b16 %v584, %v581
    %v627 = vpack.c.b16 %v585, %v582
    %v628 = vpack.c.b16 %v586, %v583
    %v629 = vpack.c.b16 %v590, %v587
    %v630 = vpack.c.b16 %v591, %v588
    %v631 = vpack.c.b16 %v592, %v589
    %v632 = vpack.c.b16 %v596, %v593
    %v633 = vpack.c.b16 %v597, %v594
    %v634 = vpack.c.b16 %v598, %v595
    %v635 = vpack.c.b16 %v602, %v599
    %v636 = vpack.c.b16 %v603, %v600
    %v637 = vpack.c.b16 %v604, %v601
    %v638 = vpack.c.b16 %v608, %v605
    %v639 = vpack.c.b16 %v609, %v606
    %v640 = vpack.c.b16 %v610, %v607
    %v641 = vpack.c.b16 %v614, %v611
    %v642 = vpack.c.b16 %v615, %v612
    %v643 = vpack.c.b16 %v616, %v613
    %v644 = vpack.c.b16 %v620, %v617
    %v645 = vpack.c.b16 %v621, %v618
    %v646 = vpack.c.b16 %v622, %v619
    %671 = vmatprep.subr.bf16.mxu0 %v624
    %672 = vmatpush1.bf16.msra.mxu0 %v623
    %673 = vmatprep.subr.bf16.mxu0 %v627
    %674 = vmatpush1.bf16.msra.mxu0 %v626
    %675 = vmatprep.subr.bf16.mxu0 %v630
    %676 = vmatpush1.bf16.msra.mxu0 %v629
    %677 = vmatprep.subr.bf16.mxu0 %v633
    %678 = vmatpush1.bf16.msra.mxu0 %v632
    %679 = vmatprep.subr.bf16.mxu0 %v636
    %680 = vmatpush1.bf16.msra.mxu0 %v635
    %681 = vmatprep.subr.bf16.mxu0 %v639
    %682 = vmatpush1.bf16.msra.mxu0 %v638
    %683 = vmatprep.subr.bf16.mxu0 %v642
    %684 = vmatpush1.bf16.msra.mxu0 %v641
    %685 = vmatprep.subr.bf16.mxu0 %v645
    %686 = vmatpush1.bf16.msra.mxu0 %v644
    %687 = vmatprep.subr.bf16.mxu0 0
    %688 = vmatpush1.bf16.msra.mxu0 0
    %689 = vmatprep.subr.bf16.mxu0 0
    %690 = vmatpush1.bf16.msra.mxu0 0
    %691 = vmatprep.subr.bf16.mxu0 0
    %692 = vmatpush1.bf16.msra.mxu0 0
    %693 = vmatprep.subr.bf16.mxu0 0
    %694 = vmatpush1.bf16.msra.mxu0 0
    %695 = vmatprep.subr.bf16.mxu0 0
    %696 = vmatpush1.bf16.msra.mxu0 0
    %697 = vmatprep.subr.bf16.mxu0 0
    %698 = vmatpush1.bf16.msra.mxu0 0
    %699 = vmatprep.subr.bf16.mxu0 0
    %700 = vmatpush1.bf16.msra.mxu0 0
    %701 = vmatprep.subr.bf16.mxu0 0
    %702 = vmatpush1.bf16.msra.mxu0 0
    %703 = vmatprep.mubr.bf16.mxu0 0
    %704 = vmatmul.mubr.bf16.gmra.mrb[0].mxu0 %v493
    %v705 = vpop.f32.mrb[0].mxu0
    %v706 = vadd.f32 %v531, %v705
    %v707 = vpop.f32.mrb[0].mxu0
    %v708 = vadd.f32 %v535, %v707
    %v709 = vpop.f32.mrb[0].mxu0
    %v710 = vadd.f32 %v531, %v709
    %v711 = vpop.f32.mrb[0].mxu0
    %v712 = vadd.f32 %v535, %v711
    %713 = vdwg.mxu0
    %714 = vmatprep.subr.bf16.mxu0 0
    %715 = vmatpush1.bf16.msra.mxu0 %v625
    %716 = vmatprep.subr.bf16.mxu0 0
    %717 = vmatpush1.bf16.msra.mxu0 %v628
    %718 = vmatprep.subr.bf16.mxu0 0
    %719 = vmatpush1.bf16.msra.mxu0 %v631
    %720 = vmatprep.subr.bf16.mxu0 0
    %721 = vmatpush1.bf16.msra.mxu0 %v634
    %722 = vmatprep.subr.bf16.mxu0 0
    %723 = vmatpush1.bf16.msra.mxu0 %v637
    %724 = vmatprep.subr.bf16.mxu0 0
    %725 = vmatpush1.bf16.msra.mxu0 %v640
    %726 = vmatprep.subr.bf16.mxu0 0
    %727 = vmatpush1.bf16.msra.mxu0 %v643
    %728 = vmatprep.subr.bf16.mxu0 0
    %729 = vmatpush1.bf16.msra.mxu0 %v646
    %730 = vmatprep.subr.bf16.mxu0 0
    %731 = vmatpush1.bf16.msra.mxu0 0
    %732 = vmatprep.subr.bf16.mxu0 0
    %733 = vmatpush1.bf16.msra.mxu0 0
    %734 = vmatprep.subr.bf16.mxu0 0
    %735 = vmatpush1.bf16.msra.mxu0 0
    %736 = vmatprep.subr.bf16.mxu0 0
    %737 = vmatpush1.bf16.msra.mxu0 0
    %738 = vmatprep.subr.bf16.mxu0 0
    %739 = vmatpush1.bf16.msra.mxu0 0
    %740 = vmatprep.subr.bf16.mxu0 0
    %741 = vmatpush1.bf16.msra.mxu0 0
    %742 = vmatprep.subr.bf16.mxu0 0
    %743 = vmatpush1.bf16.msra.mxu0 0
    %744 = vmatprep.subr.bf16.mxu0 0
    %745 = vmatpush1.bf16.msra.mxu0 0
    %746 = vmatprep.mubr.bf16.mxu0 0
    %747 = vmatmul.mubr.bf16.gmra.mrb[0].mxu0 %v493
    %v748 = vpop.f32.mrb[0].mxu0
    %v749 = vadd.f32 %v539, %v748
    %v750 = vpop.f32.mrb[0].mxu0
    %v751 = vpop.f32.mrb[0].mxu0
    %v752 = vadd.f32 %v539, %v751
    %v753 = vpop.f32.mrb[0].mxu0
    %754 = vdwg.mxu0
    %v755 = vpack.c.bf16 %v710, %v706
    %v756 = vpack.c.bf16 %v712, %v708
    %v757 = vpack.c.bf16 %v752, %v749
    %v758 = vxor.u32 %v755, 2147516416
    %v760 = vmul.bf16 %v758, 1069105081
    %v761 = vpow.bf16.pop %v760
    %v762 = vadd.bf16 %v761, 1065369472
    %v763 = vrcp.bf16.pop %v762
    %v764 = vmul.bf16 1065369472, %v763
    %v765 = vtanh.bf16.pop %v756
    %v766 = vxor.u32 %v757, 2147516416
    %v768 = vmul.bf16 %v766, 1069105081
    %v769 = vpow.bf16.pop %v768
    %v770 = vadd.bf16 %v769, 1065369472
    %v771 = vrcp.bf16.pop %v770
    %v772 = vmul.bf16 1065369472, %v771
    %v773 = vmul.bf16 %v764, %v765
    %v774 = vtanh.bf16.pop %v773
    %v775 = vmul.bf16 %v772, %v774
    %v776 = vld [vmem:[#allocation7] sm:$0xf]
    %v777 = vld [vmem:[#allocation7 + $0x4] sm:$0xf]
    %v778 = vld [vmem:[#allocation7 + $0x8] sm:$0xf]
    %v779 = vld [vmem:[#allocation7 + $0xc] sm:$0xf]
    %v780 = vld [vmem:[#allocation7 + $0x10] sm:$0xf]
    %v781 = vld [vmem:[#allocation7 + $0x14] sm:$0xf]
    %v782 = vld [vmem:[#allocation7 + $0x18] sm:$0xf]
    %v783 = vld [vmem:[#allocation7 + $0x1c] sm:$0xf]
    %v784 = vld [vmem:[#allocation7 + $0x20] sm:$0xf]
    %v785 = vld [vmem:[#allocation7 + $0x24] sm:$0xf]
    %v786 = vld [vmem:[#allocation7 + $0x28] sm:$0xf]
    %v787 = vld [vmem:[#allocation7 + $0x2c] sm:$0xf]
    %v788 = vld [vmem:[#allocation7 + $0x30] sm:$0xf]
    %v789 = vld [vmem:[#allocation7 + $0x34] sm:$0xf]
    %v790 = vld [vmem:[#allocation7 + $0x38] sm:$0xf]
    %v791 = vld [vmem:[#allocation7 + $0x3c] sm:$0xf]
    %v792 = vld [vmem:[%s8] sm:$0x1]
    %v794 = vlaneseq
    %v795 = vshrl.u32 %v794, 7
    %v796 = vsub.s32 0, %v795
    %v797 = vrot.slane %v792, %v796
    %v815 = vunpack.c.l.b16 %v776
    %v816 = vunpack.c.l.b16 %v777
    %v817 = vunpack.c.l.b16 %v778
    %v818 = vunpack.c.l.b16 %v779
    %v819 = vunpack.c.l.b16 %v780
    %v820 = vunpack.c.l.b16 %v781
    %v821 = vunpack.c.l.b16 %v782
    %v822 = vunpack.c.l.b16 %v783
    %v823 = vunpack.c.l.b16 %v784
    %v824 = vunpack.c.l.b16 %v785
    %v825 = vunpack.c.l.b16 %v786
    %v826 = vunpack.c.l.b16 %v787
    %v827 = vunpack.c.l.b16 %v788
    %v828 = vunpack.c.l.b16 %v789
    %v829 = vunpack.c.l.b16 %v790
    %v830 = vunpack.c.l.b16 %v791
    %v831 = vpack.c.b16 %v816, %v815
    %v832 = vpack.c.b16 %v818, %v817
    %v833 = vpack.c.b16 %v820, %v819
    %v834 = vpack.c.b16 %v822, %v821
    %v835 = vpack.c.b16 %v824, %v823
    %v836 = vpack.c.b16 %v826, %v825
    %v837 = vpack.c.b16 %v828, %v827
    %v838 = vpack.c.b16 %v830, %v829
    %847 = vmatprep.subr.bf16.mxu0 0
    %848 = vmatpush1.bf16.msra.mxu0 %v831
    %849 = vmatprep.subr.bf16.mxu0 0
    %850 = vmatpush1.bf16.msra.mxu0 %v832
    %851 = vmatprep.subr.bf16.mxu0 0
    %852 = vmatpush1.bf16.msra.mxu0 %v833
    %853 = vmatprep.subr.bf16.mxu0 0
    %854 = vmatpush1.bf16.msra.mxu0 %v834
    %855 = vmatprep.subr.bf16.mxu0 0
    %856 = vmatpush1.bf16.msra.mxu0 %v835
    %857 = vmatprep.subr.bf16.mxu0 0
    %858 = vmatpush1.bf16.msra.mxu0 %v836
    %859 = vmatprep.subr.bf16.mxu0 0
    %860 = vmatpush1.bf16.msra.mxu0 %v837
    %861 = vmatprep.subr.bf16.mxu0 0
    %862 = vmatpush1.bf16.msra.mxu0 %v838
    %863 = vmatprep.subr.bf16.mxu0 0
    %864 = vmatpush1.bf16.msra.mxu0 0
    %865 = vmatprep.subr.bf16.mxu0 0
    %866 = vmatpush1.bf16.msra.mxu0 0
    %867 = vmatprep.subr.bf16.mxu0 0
    %868 = vmatpush1.bf16.msra.mxu0 0
    %869 = vmatprep.subr.bf16.mxu0 0
    %870 = vmatpush1.bf16.msra.mxu0 0
    %871 = vmatprep.subr.bf16.mxu0 0
    %872 = vmatpush1.bf16.msra.mxu0 0
    %873 = vmatprep.subr.bf16.mxu0 0
    %874 = vmatpush1.bf16.msra.mxu0 0
    %875 = vmatprep.subr.bf16.mxu0 0
    %876 = vmatpush1.bf16.msra.mxu0 0
    %877 = vmatprep.subr.bf16.mxu0 0
    %878 = vmatpush1.bf16.msra.mxu0 0
    %879 = vmatprep.mubr.bf16.mxu0 0
    %880 = vmatmul.mubr.bf16.gmra.mrb[0].mxu0 %v775
    %v881 = vpop.f32.mrb[0].mxu0
    %v882 = vadd.f32 %v797, %v881
    %v883 = vpop.f32.mrb[0].mxu0
    %v884 = vpop.f32.mrb[0].mxu0
    %v885 = vadd.f32 %v797, %v884
    %v886 = vpop.f32.mrb[0].mxu0
    %887 = vdwg.mxu0
    %888 = vst [vmem:[%s9] sm:$0xff] %v882
    %889 = vst [vmem:[%s9 + $0x8] sm:$0xff] %v885
    // Predicated region
    $region54: #{comment_classifier_forward.1} parent=1 // pred_check
      _
    $region55: #{comment_classifier_forward.1} parent=1 // pred_check_branch
      %891 = sbr.rel (0) target = $region57
    $region56: #{comment_classifier_forward.1} parent=1 // pred_region
      _
    $region57: #{comment_classifier_forward.1} parent=1 // pred_fallthru
      _
    // Predicated region
    $region58: #{comment_classifier_forward.1} parent=1 // pred_check
      _
    $region59: #{comment_classifier_forward.1} parent=1 // pred_check_branch
      %893 = sbr.rel (0) target = $region61
    $region60: #{comment_classifier_forward.1} parent=1 // pred_region
      _
    $region61: #{comment_classifier_forward.1} parent=1 // pred_fallthru
      _
    %894 = vsyncpa [#allocation3], 1
    %895 = vsyncpa [#allocation5], 1
    %896 = vsyncpa [#allocation8], 1

</llo_original>
